<compile_context>
chip_gen: v5e
topology: v5e:2x2
jax: 0.10.0
libtpu: 0.0.40
codegen_flags: <defaults>
</compile_context>

<pallas_src>
import functools
import math

import jax
import jax.numpy as jnp
import numpy as np
from jax.experimental import pallas as pl
from jax.experimental.pallas import tpu as pltpu


def _self_attn_layer_kernel(
    x_ref,       # (L, E)    tgt rows for this batch element
    pos_ref,     # (L, E)    query_pos rows
    wqk_ref,     # (E, 2E)   [scale * Wq^T | Wk^T]  (pre-transposed, scale folded)
    bqk_ref,     # (1, 2E)   [scale * bq | bk]
    wv_ref,      # (E, E)    Wv^T
    bv_ref,      # (1, E)
    wo_ref,      # (H, dh, E) per-head slices of Wo^T
    bo_ref,      # (1, E)
    gamma_ref,   # (1, E)    LayerNorm weight
    beta_ref,    # (1, E)    LayerNorm bias
    out_ref,     # (L, E)
    *,
    nhead: int,
    eps: float,
    matmul_dtype,
):
    L, E = x_ref.shape
    dh = E // nhead

    x = x_ref[...].astype(jnp.float32)                     # (L, E)
    qk_in = x + pos_ref[...].astype(jnp.float32)           # q = k = tgt + pos

    # Fused q/k in-projection: one (L, E) @ (E, 2E) matmul; v separately.
    # Matmul inputs may be bf16 (production v6e/v7x); accumulation stays f32.
    qk = jnp.dot(qk_in.astype(matmul_dtype), wqk_ref[...],
                 preferred_element_type=jnp.float32) + bqk_ref[...]   # (L, 2E)
    v = jnp.dot(x.astype(matmul_dtype), wv_ref[...],
                preferred_element_type=jnp.float32) + bv_ref[...]     # (L, E)

    # Static loop over heads: all dots are plain 2-D MXU matmuls (known-good
    # lowering).  The head-concat is fused away: each head's contribution to
    # the output projection is accumulated directly via its Wo slice.
    attn = jnp.zeros((L, E), jnp.float32)
    for h in range(nhead):
        lo, hi = h * dh, (h + 1) * dh
        q_h = qk[:, lo:hi]                                  # (L, dh), pre-scaled
        k_h = qk[:, E + lo:E + hi]                          # (L, dh)
        v_h = v[:, lo:hi]                                   # (L, dh)

        s = jnp.einsum('ld,md->lm',
                       q_h.astype(matmul_dtype), k_h.astype(matmul_dtype),
                       preferred_element_type=jnp.float32)  # (L, L)
        s = s - jnp.max(s, axis=-1, keepdims=True)
        p = jnp.exp(s)
        p = p / jnp.sum(p, axis=-1, keepdims=True)          # exact softmax

        o_h = jnp.dot(p.astype(matmul_dtype), v_h.astype(matmul_dtype),
                      preferred_element_type=jnp.float32)   # (L, dh)
        # Fused head-concat + output projection: o_h @ Wo^T[h*dh:(h+1)*dh, :].
        attn = attn + jnp.dot(o_h.astype(matmul_dtype), wo_ref[h],
                              preferred_element_type=jnp.float32)     # (L, E)

    attn = attn + bo_ref[...]

    # Residual + LayerNorm (f32).
    y = x + attn
    mean = jnp.mean(y, axis=-1, keepdims=True)
    var = jnp.mean(jnp.square(y - mean), axis=-1, keepdims=True)
    y = (y - mean) * jax.lax.rsqrt(var + eps)
    out_ref[...] = (y * gamma_ref[...] + beta_ref[...]).astype(out_ref.dtype)


def self_attention_layer(tgt_lbe, query_pos_lbe, params, *, nhead, eps=1e-5,
                         matmul_dtype=jnp.float32):
    """tgt_lbe, query_pos_lbe: (L, B, E) float32 (PyTorch nn.MultiheadAttention layout).

    matmul_dtype: jnp.float32 (default, exact) or jnp.bfloat16 for production
    Mask2Former sizes on v6e/v7x (MXU-native inputs, f32 accumulation).
    """
    L, B, E = tgt_lbe.shape
    dh = E // nhead
    scale = 1.0 / math.sqrt(dh)

    # (L,B,E) -> (B,L,E): cheap wrapper transposes at these sizes; the grid then
    # tiles cleanly over the leading batch axis with full (L, E) minor blocks.
    x = jnp.transpose(tgt_lbe, (1, 0, 2))
    pos = jnp.transpose(query_pos_lbe, (1, 0, 2))

    # Host-side (one-time) weight packing:
    #  - pre-transpose so the kernel does x @ W (no in-kernel .T),
    #  - fuse Wq/Wk into one (E, 2E) matrix,
    #  - fold the 1/sqrt(dh) query scale into Wq / bq (mathematically exact),
    #  - split Wo^T per head -> (H, dh, E) so the head-concat is fused away.
    w_qk_t = jnp.concatenate([params["wq"].T * scale, params["wk"].T], axis=1)
    b_qk = jnp.concatenate([params["bq"] * scale, params["bk"]]).reshape(1, 2 * E)
    w_v_t = params["wv"].T
    b_v = params["bv"].reshape(1, E)
    w_o3 = params["wo"].T.reshape(nhead, dh, E)
    b_o = params["bo"].reshape(1, E)
    gamma = params["ln_w"].reshape(1, E)
    beta = params["ln_b"].reshape(1, E)

    if matmul_dtype != jnp.float32:
        # Halve weight DMA/VMEM bytes and feed MXU-native operands.
        w_qk_t = w_qk_t.astype(matmul_dtype)
        w_v_t = w_v_t.astype(matmul_dtype)
        w_o3 = w_o3.astype(matmul_dtype)

    kernel = functools.partial(
        _self_attn_layer_kernel, nhead=nhead, eps=eps, matmul_dtype=matmul_dtype)

    # Grid over batch: "parallel" so v7x can shard it across its 2 TensorCores;
    # weights/biases use constant index_maps and stay resident across steps.
    in_specs = [
        pl.BlockSpec((None, L, E), lambda b: (b, 0, 0)),        # x
        pl.BlockSpec((None, L, E), lambda b: (b, 0, 0)),        # pos
        pl.BlockSpec((E, 2 * E), lambda b: (0, 0)),             # wqk
        pl.BlockSpec((1, 2 * E), lambda b: (0, 0)),             # bqk
        pl.BlockSpec((E, E), lambda b: (0, 0)),                 # wv
        pl.BlockSpec((1, E), lambda b: (0, 0)),                 # bv
        pl.BlockSpec((nhead, dh, E), lambda b: (0, 0, 0)),      # wo (per-head)
        pl.BlockSpec((1, E), lambda b: (0, 0)),                 # bo
        pl.BlockSpec((1, E), lambda b: (0, 0)),                 # ln gamma
        pl.BlockSpec((1, E), lambda b: (0, 0)),                 # ln beta
    ]
    out_spec = pl.BlockSpec((None, L, E), lambda b: (b, 0, 0))

    # Advisory cost estimate so XLA schedules around the custom call.
    flops = (2 * (B * L) * E * (2 * E)          # fused q/k in-projection
             + 2 * (B * L) * E * E              # v in-projection
             + 2 * 2 * B * nhead * L * L * dh   # QK^T and PV
             + 2 * (B * L) * E * E)             # output projection
    transcendentals = B * nhead * L * L + B * L
    wbytes = 2 if matmul_dtype != jnp.float32 else 4
    bytes_accessed = 4 * (3 * B * L * E) + wbytes * (4 * E * E) + 4 * 7 * E

    out = pl.pallas_call(
        kernel,
        out_shape=jax.ShapeDtypeStruct((B, L, E), tgt_lbe.dtype),
        grid=(B,),
        in_specs=in_specs,
        out_specs=out_spec,
        compiler_params=pltpu.CompilerParams(
            dimension_semantics=("parallel",)),
        cost_estimate=pl.CostEstimate(
            flops=flops,
            transcendentals=transcendentals,
            bytes_accessed=bytes_accessed,
        ),
    )(x, pos, w_qk_t, b_qk, w_v_t, b_v, w_o3, b_o, gamma, beta)

    # (B, L, E) -> (L, B, E)
    return jnp.transpose(out, (1, 0, 2))


def _reference(tgt_lbe, pos_lbe, params, nhead, eps=1e-5):
    """Pure-JAX reference mirroring nn.MultiheadAttention + residual + LayerNorm."""
    L, B, E = tgt_lbe.shape
    dh = E // nhead
    x = jnp.transpose(tgt_lbe, (1, 0, 2))  # (B, L, E)
    p = jnp.transpose(pos_lbe, (1, 0, 2))
    qk = x + p
    q = qk @ params["wq"].T + params["bq"]
    k = qk @ params["wk"].T + params["bk"]
    v = x @ params["wv"].T + params["bv"]

    def split(t):
        return t.reshape(B, L, nhead, dh).transpose(0, 2, 1, 3)  # (B, H, L, dh)

    qh, kh, vh = split(q), split(k), split(v)
    s = jnp.einsum("bhld,bhmd->bhlm", qh, kh) / math.sqrt(dh)
    patt = jax.nn.softmax(s, axis=-1)
    o = jnp.einsum("bhlm,bhmd->bhld", patt, vh)
    o = o.transpose(0, 2, 1, 3).reshape(B, L, E)
    o = o @ params["wo"].T + params["bo"]
    y = x + o
    mean = jnp.mean(y, axis=-1, keepdims=True)
    var = jnp.mean((y - mean) ** 2, axis=-1, keepdims=True)
    y = (y - mean) / jnp.sqrt(var + eps)
    y = y * params["ln_w"] + params["ln_b"]
    return jnp.transpose(y, (1, 0, 2))


def _xavier_uniform(key, shape):
    fan_in, fan_out = shape[1], shape[0]
    limit = math.sqrt(6.0 / (fan_in + fan_out))
    return jax.random.uniform(key, shape, jnp.float32, -limit, limit)


if __name__ == "__main__":
    # Small shapes consistent with the module: seq=8, batch=2, d_model=32, nhead=4.
    L, B, E, H = 8, 2, 32, 4

    key = jax.random.PRNGKey(0)
    keys = jax.random.split(key, 8)

    # Deterministic synthetic parameters (xavier_uniform for dim>1 params, zeros
    # for biases, ones/zeros for LayerNorm — matching _reset_parameters + defaults).
    params = {
        "wq": _xavier_uniform(keys[0], (E, E)),
        "wk": _xavier_uniform(keys[1], (E, E)),
        "wv": _xavier_uniform(keys[2], (E, E)),
        "bq": jnp.zeros((E,), jnp.float32),
        "bk": jnp.zeros((E,), jnp.float32),
        "bv": jnp.zeros((E,), jnp.float32),
        "wo": _xavier_uniform(keys[3], (E, E)),
        "bo": jnp.zeros((E,), jnp.float32),
        "ln_w": jnp.ones((E,), jnp.float32),
        "ln_b": jnp.zeros((E,), jnp.float32),
    }

    tgt = jax.random.normal(keys[4], (L, B, E), jnp.float32)
    query_pos = jax.random.normal(keys[5], (L, B, E), jnp.float32)

    out = self_attention_layer(tgt, query_pos, params, nhead=H)
    out = jax.block_until_ready(out)

    ref = _reference(tgt, query_pos, params, H)
    # Exact (f32, exact softmax division) path -> tight tolerance.
    np.testing.assert_allclose(np.asarray(out), np.asarray(ref), rtol=1e-4, atol=1e-4)

    print("KERNEL_OK")
</pallas_src>

<mosaic_0001>
module attributes {stable_mosaic.version = 11 : i64} {
  func.func @_self_attn_layer_kernel(%arg0: i32, %arg1: memref<1x8x32xf32, #tpu.memory_space<vmem>>, %arg2: memref<1x8x32xf32, #tpu.memory_space<vmem>>, %arg3: memref<32x64xf32, #tpu.memory_space<vmem>>, %arg4: memref<1x64xf32, #tpu.memory_space<vmem>>, %arg5: memref<32x32xf32, #tpu.memory_space<vmem>>, %arg6: memref<1x32xf32, #tpu.memory_space<vmem>>, %arg7: memref<4x8x32xf32, #tpu.memory_space<vmem>>, %arg8: memref<1x32xf32, #tpu.memory_space<vmem>>, %arg9: memref<1x32xf32, #tpu.memory_space<vmem>>, %arg10: memref<1x32xf32, #tpu.memory_space<vmem>>, %arg11: memref<1x8x32xf32, #tpu.memory_space<vmem>>) attributes {dimension_semantics = [#tpu.dimension_semantics<parallel>], iteration_bounds = array<i64: 2>, scalar_prefetch = 0 : i64, scratch_operands = 0 : i64, tpu.core_type = #tpu.core_type<tc>, window_params = [{transform_indices = @transform_0, window_bounds = array<i64: 1, 8, 32>}, {transform_indices = @transform_1, window_bounds = array<i64: 1, 8, 32>}, {pipeline_mode = #tpu.pipeline_mode<synchronous>, transform_indices = @transform_2, window_bounds = array<i64: 32, 64>}, {pipeline_mode = #tpu.pipeline_mode<synchronous>, transform_indices = @transform_3, window_bounds = array<i64: 1, 64>}, {pipeline_mode = #tpu.pipeline_mode<synchronous>, transform_indices = @transform_4, window_bounds = array<i64: 32, 32>}, {pipeline_mode = #tpu.pipeline_mode<synchronous>, transform_indices = @transform_5, window_bounds = array<i64: 1, 32>}, {pipeline_mode = #tpu.pipeline_mode<synchronous>, transform_indices = @transform_6, window_bounds = array<i64: 4, 8, 32>}, {pipeline_mode = #tpu.pipeline_mode<synchronous>, transform_indices = @transform_7, window_bounds = array<i64: 1, 32>}, {pipeline_mode = #tpu.pipeline_mode<synchronous>, transform_indices = @transform_8, window_bounds = array<i64: 1, 32>}, {pipeline_mode = #tpu.pipeline_mode<synchronous>, transform_indices = @transform_9, window_bounds = array<i64: 1, 32>}, {transform_indices = @transform_10, window_bounds = array<i64: 1, 8, 32>}]} {
    %c0 = arith.constant 0 : index
    %c0_0 = arith.constant 0 : index
    %c0_1 = arith.constant 0 : index
    %0 = vector.load %arg1[%c0, %c0_0, %c0_1] : memref<1x8x32xf32, #tpu.memory_space<vmem>>, vector<1x8x32xf32>
    %1 = vector.shape_cast %0 : vector<1x8x32xf32> to vector<8x32xf32>
    %c0_2 = arith.constant 0 : index
    %c0_3 = arith.constant 0 : index
    %c0_4 = arith.constant 0 : index
    %2 = vector.load %arg2[%c0_2, %c0_3, %c0_4] : memref<1x8x32xf32, #tpu.memory_space<vmem>>, vector<1x8x32xf32>
    %3 = vector.shape_cast %2 : vector<1x8x32xf32> to vector<8x32xf32>
    %4 = arith.addf %1, %3 : vector<8x32xf32>
    %c0_5 = arith.constant 0 : index
    %c0_6 = arith.constant 0 : index
    %5 = vector.load %arg3[%c0_5, %c0_6] : memref<32x64xf32, #tpu.memory_space<vmem>>, vector<32x64xf32>
    %cst = arith.constant dense<0.000000e+00> : vector<8x64xf32>
    %6 = tpu.matmul %4, %5, %cst {dimension_numbers = #tpu.dot_dimension_numbers<[1], [0], [0], [1], [0, 0, 1, 1], [], []>} : vector<8x32xf32>, vector<32x64xf32>, vector<8x64xf32> -> vector<8x64xf32>
    %c0_7 = arith.constant 0 : index
    %c0_8 = arith.constant 0 : index
    %7 = vector.load %arg4[%c0_7, %c0_8] : memref<1x64xf32, #tpu.memory_space<vmem>>, vector<1x64xf32>
    %8 = vector.broadcast %7 : vector<1x64xf32> to vector<8x64xf32>
    %9 = arith.addf %6, %8 : vector<8x64xf32>
    %c0_9 = arith.constant 0 : index
    %c0_10 = arith.constant 0 : index
    %10 = vector.load %arg5[%c0_9, %c0_10] : memref<32x32xf32, #tpu.memory_space<vmem>>, vector<32x32xf32>
    %cst_11 = arith.constant dense<0.000000e+00> : vector<8x32xf32>
    %11 = tpu.matmul %1, %10, %cst_11 {dimension_numbers = #tpu.dot_dimension_numbers<[1], [0], [0], [1], [0, 0, 1, 1], [], []>} : vector<8x32xf32>, vector<32x32xf32>, vector<8x32xf32> -> vector<8x32xf32>
    %c0_12 = arith.constant 0 : index
    %c0_13 = arith.constant 0 : index
    %12 = vector.load %arg6[%c0_12, %c0_13] : memref<1x32xf32, #tpu.memory_space<vmem>>, vector<1x32xf32>
    %13 = vector.broadcast %12 : vector<1x32xf32> to vector<8x32xf32>
    %14 = arith.addf %11, %13 : vector<8x32xf32>
    %cst_14 = arith.constant 0.000000e+00 : f32
    %15 = vector.broadcast %cst_14 : f32 to vector<8x32xf32>
    %16 = vector.extract_strided_slice %9 {offsets = [0, 0], sizes = [8, 8], strides = [1, 1]} : vector<8x64xf32> to vector<8x8xf32>
    %17 = vector.extract_strided_slice %9 {offsets = [0, 32], sizes = [8, 8], strides = [1, 1]} : vector<8x64xf32> to vector<8x8xf32>
    %18 = vector.extract_strided_slice %14 {offsets = [0, 0], sizes = [8, 8], strides = [1, 1]} : vector<8x32xf32> to vector<8x8xf32>
    "tpu.trace_start"() <{level = 10 : i32, message = "ld,md->lm"}> : () -> ()
    %cst_15 = arith.constant dense<0.000000e+00> : vector<8x8xf32>
    %19 = tpu.matmul %16, %17, %cst_15 {dimension_numbers = #tpu.dot_dimension_numbers<[1], [1], [0], [0], [0, 0, 1, 0], [], []>} : vector<8x8xf32>, vector<8x8xf32>, vector<8x8xf32> -> vector<8x8xf32>
    "tpu.trace_stop"() : () -> ()
    %cst_16 = arith.constant dense<0xFF800000> : vector<8xf32>
    %20 = vector.multi_reduction <maximumf>, %19, %cst_16 [1] : vector<8x8xf32> to vector<8xf32>
    %21 = vector.shape_cast %20 : vector<8xf32> to vector<8x1xf32>
    %22 = vector.broadcast %21 : vector<8x1xf32> to vector<8x8xf32>
    %23 = arith.subf %19, %22 : vector<8x8xf32>
    %24 = math.exp %23 : vector<8x8xf32>
    %cst_17 = arith.constant dense<0.000000e+00> : vector<8xf32>
    %25 = vector.multi_reduction <add>, %24, %cst_17 [1] : vector<8x8xf32> to vector<8xf32>
    %26 = vector.shape_cast %25 : vector<8xf32> to vector<8x1xf32>
    %27 = vector.broadcast %26 : vector<8x1xf32> to vector<8x8xf32>
    %28 = arith.divf %24, %27 : vector<8x8xf32>
    %cst_18 = arith.constant dense<0.000000e+00> : vector<8x8xf32>
    %29 = tpu.matmul %28, %18, %cst_18 {dimension_numbers = #tpu.dot_dimension_numbers<[1], [0], [0], [1], [0, 0, 1, 1], [], []>} : vector<8x8xf32>, vector<8x8xf32>, vector<8x8xf32> -> vector<8x8xf32>
    %c0_19 = arith.constant 0 : index
    %c0_20 = arith.constant 0 : index
    %c0_21 = arith.constant 0 : index
    %30 = vector.load %arg7[%c0_19, %c0_20, %c0_21] : memref<4x8x32xf32, #tpu.memory_space<vmem>>, vector<1x8x32xf32>
    %31 = vector.shape_cast %30 : vector<1x8x32xf32> to vector<8x32xf32>
    %cst_22 = arith.constant dense<0.000000e+00> : vector<8x32xf32>
    %32 = tpu.matmul %29, %31, %cst_22 {dimension_numbers = #tpu.dot_dimension_numbers<[1], [0], [0], [1], [0, 0, 1, 1], [], []>} : vector<8x8xf32>, vector<8x32xf32>, vector<8x32xf32> -> vector<8x32xf32>
    %33 = arith.addf %15, %32 : vector<8x32xf32>
    %34 = vector.extract_strided_slice %9 {offsets = [0, 8], sizes = [8, 8], strides = [1, 1]} : vector<8x64xf32> to vector<8x8xf32>
    %35 = vector.extract_strided_slice %9 {offsets = [0, 40], sizes = [8, 8], strides = [1, 1]} : vector<8x64xf32> to vector<8x8xf32>
    %36 = vector.extract_strided_slice %14 {offsets = [0, 8], sizes = [8, 8], strides = [1, 1]} : vector<8x32xf32> to vector<8x8xf32>
    "tpu.trace_start"() <{level = 10 : i32, message = "ld,md->lm"}> : () -> ()
    %cst_23 = arith.constant dense<0.000000e+00> : vector<8x8xf32>
    %37 = tpu.matmul %34, %35, %cst_23 {dimension_numbers = #tpu.dot_dimension_numbers<[1], [1], [0], [0], [0, 0, 1, 0], [], []>} : vector<8x8xf32>, vector<8x8xf32>, vector<8x8xf32> -> vector<8x8xf32>
    "tpu.trace_stop"() : () -> ()
    %cst_24 = arith.constant dense<0xFF800000> : vector<8xf32>
    %38 = vector.multi_reduction <maximumf>, %37, %cst_24 [1] : vector<8x8xf32> to vector<8xf32>
    %39 = vector.shape_cast %38 : vector<8xf32> to vector<8x1xf32>
    %40 = vector.broadcast %39 : vector<8x1xf32> to vector<8x8xf32>
    %41 = arith.subf %37, %40 : vector<8x8xf32>
    %42 = math.exp %41 : vector<8x8xf32>
    %cst_25 = arith.constant dense<0.000000e+00> : vector<8xf32>
    %43 = vector.multi_reduction <add>, %42, %cst_25 [1] : vector<8x8xf32> to vector<8xf32>
    %44 = vector.shape_cast %43 : vector<8xf32> to vector<8x1xf32>
    %45 = vector.broadcast %44 : vector<8x1xf32> to vector<8x8xf32>
    %46 = arith.divf %42, %45 : vector<8x8xf32>
    %cst_26 = arith.constant dense<0.000000e+00> : vector<8x8xf32>
    %47 = tpu.matmul %46, %36, %cst_26 {dimension_numbers = #tpu.dot_dimension_numbers<[1], [0], [0], [1], [0, 0, 1, 1], [], []>} : vector<8x8xf32>, vector<8x8xf32>, vector<8x8xf32> -> vector<8x8xf32>
    %c1 = arith.constant 1 : index
    %c0_27 = arith.constant 0 : index
    %c0_28 = arith.constant 0 : index
    %48 = vector.load %arg7[%c1, %c0_27, %c0_28] : memref<4x8x32xf32, #tpu.memory_space<vmem>>, vector<1x8x32xf32>
    %49 = vector.shape_cast %48 : vector<1x8x32xf32> to vector<8x32xf32>
    %cst_29 = arith.constant dense<0.000000e+00> : vector<8x32xf32>
    %50 = tpu.matmul %47, %49, %cst_29 {dimension_numbers = #tpu.dot_dimension_numbers<[1], [0], [0], [1], [0, 0, 1, 1], [], []>} : vector<8x8xf32>, vector<8x32xf32>, vector<8x32xf32> -> vector<8x32xf32>
    %51 = arith.addf %33, %50 : vector<8x32xf32>
    %52 = vector.extract_strided_slice %9 {offsets = [0, 16], sizes = [8, 8], strides = [1, 1]} : vector<8x64xf32> to vector<8x8xf32>
    %53 = vector.extract_strided_slice %9 {offsets = [0, 48], sizes = [8, 8], strides = [1, 1]} : vector<8x64xf32> to vector<8x8xf32>
    %54 = vector.extract_strided_slice %14 {offsets = [0, 16], sizes = [8, 8], strides = [1, 1]} : vector<8x32xf32> to vector<8x8xf32>
    "tpu.trace_start"() <{level = 10 : i32, message = "ld,md->lm"}> : () -> ()
    %cst_30 = arith.constant dense<0.000000e+00> : vector<8x8xf32>
    %55 = tpu.matmul %52, %53, %cst_30 {dimension_numbers = #tpu.dot_dimension_numbers<[1], [1], [0], [0], [0, 0, 1, 0], [], []>} : vector<8x8xf32>, vector<8x8xf32>, vector<8x8xf32> -> vector<8x8xf32>
    "tpu.trace_stop"() : () -> ()
    %cst_31 = arith.constant dense<0xFF800000> : vector<8xf32>
    %56 = vector.multi_reduction <maximumf>, %55, %cst_31 [1] : vector<8x8xf32> to vector<8xf32>
    %57 = vector.shape_cast %56 : vector<8xf32> to vector<8x1xf32>
    %58 = vector.broadcast %57 : vector<8x1xf32> to vector<8x8xf32>
    %59 = arith.subf %55, %58 : vector<8x8xf32>
    %60 = math.exp %59 : vector<8x8xf32>
    %cst_32 = arith.constant dense<0.000000e+00> : vector<8xf32>
    %61 = vector.multi_reduction <add>, %60, %cst_32 [1] : vector<8x8xf32> to vector<8xf32>
    %62 = vector.shape_cast %61 : vector<8xf32> to vector<8x1xf32>
    %63 = vector.broadcast %62 : vector<8x1xf32> to vector<8x8xf32>
    %64 = arith.divf %60, %63 : vector<8x8xf32>
    %cst_33 = arith.constant dense<0.000000e+00> : vector<8x8xf32>
    %65 = tpu.matmul %64, %54, %cst_33 {dimension_numbers = #tpu.dot_dimension_numbers<[1], [0], [0], [1], [0, 0, 1, 1], [], []>} : vector<8x8xf32>, vector<8x8xf32>, vector<8x8xf32> -> vector<8x8xf32>
    %c2 = arith.constant 2 : index
    %c0_34 = arith.constant 0 : index
    %c0_35 = arith.constant 0 : index
    %66 = vector.load %arg7[%c2, %c0_34, %c0_35] : memref<4x8x32xf32, #tpu.memory_space<vmem>>, vector<1x8x32xf32>
    %67 = vector.shape_cast %66 : vector<1x8x32xf32> to vector<8x32xf32>
    %cst_36 = arith.constant dense<0.000000e+00> : vector<8x32xf32>
    %68 = tpu.matmul %65, %67, %cst_36 {dimension_numbers = #tpu.dot_dimension_numbers<[1], [0], [0], [1], [0, 0, 1, 1], [], []>} : vector<8x8xf32>, vector<8x32xf32>, vector<8x32xf32> -> vector<8x32xf32>
    %69 = arith.addf %51, %68 : vector<8x32xf32>
    %70 = vector.extract_strided_slice %9 {offsets = [0, 24], sizes = [8, 8], strides = [1, 1]} : vector<8x64xf32> to vector<8x8xf32>
    %71 = vector.extract_strided_slice %9 {offsets = [0, 56], sizes = [8, 8], strides = [1, 1]} : vector<8x64xf32> to vector<8x8xf32>
    %72 = vector.extract_strided_slice %14 {offsets = [0, 24], sizes = [8, 8], strides = [1, 1]} : vector<8x32xf32> to vector<8x8xf32>
    "tpu.trace_start"() <{level = 10 : i32, message = "ld,md->lm"}> : () -> ()
    %cst_37 = arith.constant dense<0.000000e+00> : vector<8x8xf32>
    %73 = tpu.matmul %70, %71, %cst_37 {dimension_numbers = #tpu.dot_dimension_numbers<[1], [1], [0], [0], [0, 0, 1, 0], [], []>} : vector<8x8xf32>, vector<8x8xf32>, vector<8x8xf32> -> vector<8x8xf32>
    "tpu.trace_stop"() : () -> ()
    %cst_38 = arith.constant dense<0xFF800000> : vector<8xf32>
    %74 = vector.multi_reduction <maximumf>, %73, %cst_38 [1] : vector<8x8xf32> to vector<8xf32>
    %75 = vector.shape_cast %74 : vector<8xf32> to vector<8x1xf32>
    %76 = vector.broadcast %75 : vector<8x1xf32> to vector<8x8xf32>
    %77 = arith.subf %73, %76 : vector<8x8xf32>
    %78 = math.exp %77 : vector<8x8xf32>
    %cst_39 = arith.constant dense<0.000000e+00> : vector<8xf32>
    %79 = vector.multi_reduction <add>, %78, %cst_39 [1] : vector<8x8xf32> to vector<8xf32>
    %80 = vector.shape_cast %79 : vector<8xf32> to vector<8x1xf32>
    %81 = vector.broadcast %80 : vector<8x1xf32> to vector<8x8xf32>
    %82 = arith.divf %78, %81 : vector<8x8xf32>
    %cst_40 = arith.constant dense<0.000000e+00> : vector<8x8xf32>
    %83 = tpu.matmul %82, %72, %cst_40 {dimension_numbers = #tpu.dot_dimension_numbers<[1], [0], [0], [1], [0, 0, 1, 1], [], []>} : vector<8x8xf32>, vector<8x8xf32>, vector<8x8xf32> -> vector<8x8xf32>
    %c3 = arith.constant 3 : index
    %c0_41 = arith.constant 0 : index
    %c0_42 = arith.constant 0 : index
    %84 = vector.load %arg7[%c3, %c0_41, %c0_42] : memref<4x8x32xf32, #tpu.memory_space<vmem>>, vector<1x8x32xf32>
    %85 = vector.shape_cast %84 : vector<1x8x32xf32> to vector<8x32xf32>
    %cst_43 = arith.constant dense<0.000000e+00> : vector<8x32xf32>
    %86 = tpu.matmul %83, %85, %cst_43 {dimension_numbers = #tpu.dot_dimension_numbers<[1], [0], [0], [1], [0, 0, 1, 1], [], []>} : vector<8x8xf32>, vector<8x32xf32>, vector<8x32xf32> -> vector<8x32xf32>
    %87 = arith.addf %69, %86 : vector<8x32xf32>
    %c0_44 = arith.constant 0 : index
    %c0_45 = arith.constant 0 : index
    %88 = vector.load %arg8[%c0_44, %c0_45] : memref<1x32xf32, #tpu.memory_space<vmem>>, vector<1x32xf32>
    %89 = vector.broadcast %88 : vector<1x32xf32> to vector<8x32xf32>
    %90 = arith.addf %87, %89 : vector<8x32xf32>
    %91 = arith.addf %1, %90 : vector<8x32xf32>
    %cst_46 = arith.constant dense<0.000000e+00> : vector<8xf32>
    %92 = vector.multi_reduction <add>, %91, %cst_46 [1] : vector<8x32xf32> to vector<8xf32>
    %93 = vector.shape_cast %92 : vector<8xf32> to vector<8x1xf32>
    %cst_47 = arith.constant 3.200000e+01 : f32
    %94 = vector.broadcast %cst_47 : f32 to vector<8x1xf32>
    %95 = arith.divf %93, %94 : vector<8x1xf32>
    %96 = vector.broadcast %95 : vector<8x1xf32> to vector<8x32xf32>
    %97 = arith.subf %91, %96 : vector<8x32xf32>
    %98 = arith.mulf %97, %97 : vector<8x32xf32>
    %cst_48 = arith.constant dense<0.000000e+00> : vector<8xf32>
    %99 = vector.multi_reduction <add>, %98, %cst_48 [1] : vector<8x32xf32> to vector<8xf32>
    %100 = vector.shape_cast %99 : vector<8xf32> to vector<8x1xf32>
    %cst_49 = arith.constant 3.200000e+01 : f32
    %101 = vector.broadcast %cst_49 : f32 to vector<8x1xf32>
    %102 = arith.divf %100, %101 : vector<8x1xf32>
    %103 = vector.broadcast %95 : vector<8x1xf32> to vector<8x32xf32>
    %104 = arith.subf %91, %103 : vector<8x32xf32>
    %cst_50 = arith.constant 9.99999974E-6 : f32
    %105 = vector.broadcast %cst_50 : f32 to vector<8x1xf32>
    %106 = arith.addf %102, %105 : vector<8x1xf32>
    %107 = math.rsqrt %106 : vector<8x1xf32>
    %108 = vector.broadcast %107 : vector<8x1xf32> to vector<8x32xf32>
    %109 = arith.mulf %104, %108 : vector<8x32xf32>
    %c0_51 = arith.constant 0 : index
    %c0_52 = arith.constant 0 : index
    %110 = vector.load %arg9[%c0_51, %c0_52] : memref<1x32xf32, #tpu.memory_space<vmem>>, vector<1x32xf32>
    %111 = vector.broadcast %110 : vector<1x32xf32> to vector<8x32xf32>
    %112 = arith.mulf %109, %111 : vector<8x32xf32>
    %c0_53 = arith.constant 0 : index
    %c0_54 = arith.constant 0 : index
    %113 = vector.load %arg10[%c0_53, %c0_54] : memref<1x32xf32, #tpu.memory_space<vmem>>, vector<1x32xf32>
    %114 = vector.broadcast %113 : vector<1x32xf32> to vector<8x32xf32>
    %115 = arith.addf %112, %114 : vector<8x32xf32>
    %c0_55 = arith.constant 0 : index
    %c0_56 = arith.constant 0 : index
    %c0_57 = arith.constant 0 : index
    %116 = vector.load %arg11[%c0_55, %c0_56, %c0_57] : memref<1x8x32xf32, #tpu.memory_space<vmem>>, vector<1x8x32xf32>
    %117 = vector.shape_cast %116 : vector<1x8x32xf32> to vector<8x32xf32>
    %118 = vector.shape_cast %115 : vector<8x32xf32> to vector<1x8x32xf32>
    tpu.vector_store %arg11[%c0_55, %c0_56, %c0_57], %118 {strides = array<i32>} : memref<1x8x32xf32, #tpu.memory_space<vmem>>, vector<1x8x32xf32>,
    return
  }
  func.func @transform_0(%arg0: i32) -> (i32, i32, i32) {
    %c0_i32 = arith.constant 0 : i32
    %c0_i32_0 = arith.constant 0 : i32
    %c0_i32_1 = arith.constant 0 : i32
    return %arg0, %c0_i32, %c0_i32_0 : i32, i32, i32
  }
  func.func @transform_1(%arg0: i32) -> (i32, i32, i32) {
    %c0_i32 = arith.constant 0 : i32
    %c0_i32_0 = arith.constant 0 : i32
    %c0_i32_1 = arith.constant 0 : i32
    return %arg0, %c0_i32, %c0_i32_0 : i32, i32, i32
  }
  func.func @transform_2(%arg0: i32) -> (i32, i32) {
    %c0_i32 = arith.constant 0 : i32
    %c0_i32_0 = arith.constant 0 : i32
    %c0_i32_1 = arith.constant 0 : i32
    return %c0_i32, %c0_i32_0 : i32, i32
  }
  func.func @transform_3(%arg0: i32) -> (i32, i32) {
    %c0_i32 = arith.constant 0 : i32
    %c0_i32_0 = arith.constant 0 : i32
    %c0_i32_1 = arith.constant 0 : i32
    return %c0_i32, %c0_i32_0 : i32, i32
  }
  func.func @transform_4(%arg0: i32) -> (i32, i32) {
    %c0_i32 = arith.constant 0 : i32
    %c0_i32_0 = arith.constant 0 : i32
    %c0_i32_1 = arith.constant 0 : i32
    return %c0_i32, %c0_i32_0 : i32, i32
  }
  func.func @transform_5(%arg0: i32) -> (i32, i32) {
    %c0_i32 = arith.constant 0 : i32
    %c0_i32_0 = arith.constant 0 : i32
    %c0_i32_1 = arith.constant 0 : i32
    return %c0_i32, %c0_i32_0 : i32, i32
  }
  func.func @transform_6(%arg0: i32) -> (i32, i32, i32) {
    %c0_i32 = arith.constant 0 : i32
    %c0_i32_0 = arith.constant 0 : i32
    %c0_i32_1 = arith.constant 0 : i32
    %c0_i32_2 = arith.constant 0 : i32
    return %c0_i32, %c0_i32_0, %c0_i32_1 : i32, i32, i32
  }
  func.func @transform_7(%arg0: i32) -> (i32, i32) {
    %c0_i32 = arith.constant 0 : i32
    %c0_i32_0 = arith.constant 0 : i32
    %c0_i32_1 = arith.constant 0 : i32
    return %c0_i32, %c0_i32_0 : i32, i32
  }
  func.func @transform_8(%arg0: i32) -> (i32, i32) {
    %c0_i32 = arith.constant 0 : i32
    %c0_i32_0 = arith.constant 0 : i32
    %c0_i32_1 = arith.constant 0 : i32
    return %c0_i32, %c0_i32_0 : i32, i32
  }
  func.func @transform_9(%arg0: i32) -> (i32, i32) {
    %c0_i32 = arith.constant 0 : i32
    %c0_i32_0 = arith.constant 0 : i32
    %c0_i32_1 = arith.constant 0 : i32
    return %c0_i32, %c0_i32_0 : i32, i32
  }
  func.func @transform_10(%arg0: i32) -> (i32, i32, i32) {
    %c0_i32 = arith.constant 0 : i32
    %c0_i32_0 = arith.constant 0 : i32
    %c0_i32_1 = arith.constant 0 : i32
    return %arg0, %c0_i32, %c0_i32_0 : i32, i32, i32
  }
}

</mosaic_0001>

<llo_original>
// kernel: tpu_custom_call.1
$region0: #{tpu_custom_call.1}
  #allocation0 [shape = 'u32[]', space=smem, size = 0x4, offset = 0x4, fixed_abs, tag = 'smem constant byte address 0x4 - core index']
  #allocation1 [shape = 'u32[72,128]{1,0:T(1,128)}', space=vmem, size = 0x9000, scoped, tag = 'internal scratch']
  %s0 = inlined_call_operand.hbm [shape: f32[2,8,32], index: 0, kind: input, shape index: {}]
  %s1 = inlined_call_operand.hbm [shape: f32[2,8,32], index: 1, kind: input, shape index: {}]
  %s2 = inlined_call_operand.hbm [shape: f32[32,64], index: 2, kind: input, shape index: {}]
  %s3 = inlined_call_operand.vmem [shape: f32[1,64], index: 3, kind: input, shape index: {}]
  %s4 = inlined_call_operand.hbm [shape: f32[32,32], index: 4, kind: input, shape index: {}]
  %s5 = inlined_call_operand.vmem [shape: f32[1,32], index: 5, kind: input, shape index: {}]
  %s6 = inlined_call_operand.hbm [shape: f32[4,8,32], index: 6, kind: input, shape index: {}]
  %s7 = inlined_call_operand.vmem [shape: f32[1,32], index: 7, kind: input, shape index: {}]
  %s8 = inlined_call_operand.vmem [shape: f32[1,32], index: 8, kind: input, shape index: {}]
  %s9 = inlined_call_operand.vmem [shape: f32[1,32], index: 9, kind: input, shape index: {}]
  %s10 = inlined_call_operand.hbm [shape: f32[2,8,32], index: 10, kind: output, shape index: {}]
  %s11 = sld [smem:[#allocation0]]
  $region93: #{tpu_custom_call.1} parent=0
    _
  %s13 = ssub.s32 1, %s11
  %s14 = scalar_select 0, %s13, %s11
  $region1: #{tpu_custom_call.1} parent=0
    #allocation2 [shape = 'u8[8192]{0}', space=vmem, size = 0x2000, scoped, tag = 'input window, operand 0']
    #allocation3 [shape = 's32[2]{0}', space=sflag, size = 0x8, scoped, tag = 'scoped memory for tpu_custom_call.1']
    #allocation4 [shape = 's32[2]{0}', space=sflag, size = 0x8, scoped, tag = 'scoped memory for tpu_custom_call.1']
    #allocation5 [shape = 'u8[8192]{0}', space=vmem, size = 0x2000, scoped, tag = 'input window, operand 1']
    #allocation6 [shape = 's32[2]{0}', space=sflag, size = 0x8, scoped, tag = 'scoped memory for tpu_custom_call.1']
    #allocation7 [shape = 'u8[16384]{0}', space=vmem, size = 0x4000, scoped, tag = 'input window, operand 2, single buffered']
    #allocation8 [shape = 'u8[16384]{0}', space=vmem, size = 0x4000, scoped, tag = 'input window, operand 4, single buffered']
    #allocation9 [shape = 's32[1]{0}', space=sflag, size = 0x4, scoped, tag = 'scoped memory for tpu_custom_call.1']
    #allocation10 [shape = 'u8[16384]{0}', space=vmem, size = 0x4000, scoped, tag = 'input window, operand 6, single buffered']
    #allocation11 [shape = 'u8[8192]{0}', space=vmem, size = 0x2000, scoped, tag = 'output window, operand 0']
    %15 = vsyncpa [#allocation3], 0
    %s16 = scalar_lea.sflag [#allocation3], 1
    %17 = vsyncpa %s16, 0
    %18 = vsyncpa [#allocation6], 0
    %s19 = scalar_lea.sflag [#allocation6], 1
    %20 = vsyncpa %s19, 0
    %21 = vsyncpa [#allocation9], 0
    %22 = vsyncpa [#allocation4], 0
    %s23 = scalar_lea.sflag [#allocation4], 1
    %24 = vsyncpa %s23, 0
    loop: start=0, step=1, limit=4
    $region2: #{tpu_custom_call.1} parent=1 // loop_pre_header
      _
    $region3: #{tpu_custom_call.1} parent=1 // loop_header
      %s26 = sphi 0, %s30
      %p27 = scmp.ge.s32.totalorder %s26, 4
      %s36 = sphi 0, %s38
      %s39 = sphi 0, %s36
      %s40 = sphi 0, %s39
      %s56 = sphi 0, %s40
      %s62 = sphi 0, %s64
      %s65 = sphi 0, %s62
      %s66 = sphi 0, %s65
      %s82 = sphi 0, %s66
      %s86 = sphi 0, %s86
      %s88 = sphi 0, %s86
      %s89 = sphi 0, %s88
      %s103 = sphi 0, %s89
      %s107 = sphi 0, %s107
      %s109 = sphi 0, %s107
      %s110 = sphi 0, %s109
      %s124 = sphi 0, %s110
      %s128 = sphi 0, %s128
      %s130 = sphi 0, %s128
      %s131 = sphi 0, %s130
      %s145 = sphi 0, %s131
      %s149 = sphi 0, %s149
      %s151 = sphi 0, %s149
      %s152 = sphi 0, %s151
      %s166 = sphi 0, %s152
      %s170 = sphi 0, %s170
      %s172 = sphi 0, %s170
      %s173 = sphi 0, %s172
      %s187 = sphi 0, %s173
      %s191 = sphi 0, %s191
      %s193 = sphi 0, %s191
      %s194 = sphi 0, %s193
      %s208 = sphi 0, %s194
      %s212 = sphi 0, %s212
      %s214 = sphi 0, %s212
      %s215 = sphi 0, %s214
      %s229 = sphi 0, %s215
      %s233 = sphi 0, %s233
      %s235 = sphi 0, %s233
      %s236 = sphi 0, %s235
      %s250 = sphi 0, %s236
      %s256 = sphi 0, %s258
      %s259 = sphi 0, %s256
      %s260 = sphi 0, %s259
      %s276 = sphi 0, %s260
    $region4: #{tpu_custom_call.1} parent=1 // loop_header_branch
      %29 = sbr.rel (%p27) target = $region8
    $region5: #{tpu_custom_call.1} parent=1 // loop_body
      %s31 = ssub.s32 %s26, 1
      %s32 = ssub.s32 %s26, 2
      %s33 = sadd.s32 %s26, 1
      %s34 = ssub.s32 %s26, %s33
      %p35 = scmp.eq.s32.totalorder %s34, 0
      %s37 = sadd.s32 %s36, 1
      %s38 = scalar_select %p35, %s36, %s37
      %p41 = pneg %p35
      %p42 = scmp.eq.s32.totalorder %s26, 1
      %p43 = por %p41, %p42
      %p44 = scmp.ne.s32.totalorder %s36, %s39
      %p45 = scmp.eq.s32.totalorder %s26, 0
      %p46 = por %p44, %p45
      %p47 = scmp.ne.s32.totalorder %s36, %s39
      %p48 = scmp.eq.s32.totalorder %s31, 1
      %p49 = por %p47, %p48
      %p50 = scmp.ne.s32.totalorder %s39, %s40
      %p51 = scmp.eq.s32.totalorder %s31, 0
      %p52 = por %p50, %p51
      %p53 = scmp.ne.s32.totalorder %s39, %s40
      %p54 = scmp.eq.s32.totalorder %s32, 1
      %p55 = por %p53, %p54
      %p57 = scmp.ne.s32.totalorder %s40, %s56
      %p58 = scmp.eq.s32.totalorder %s32, 0
      %p59 = por %p57, %p58
      %s60 = ssub.s32 %s26, %s33
      %p61 = scmp.eq.s32.totalorder %s60, 0
      %s63 = sadd.s32 %s62, 1
      %s64 = scalar_select %p61, %s62, %s63
      %p67 = pneg %p61
      %p68 = scmp.eq.s32.totalorder %s26, 1
      %p69 = por %p67, %p68
      %p70 = scmp.ne.s32.totalorder %s62, %s65
      %p71 = scmp.eq.s32.totalorder %s26, 0
      %p72 = por %p70, %p71
      %p73 = scmp.ne.s32.totalorder %s62, %s65
      %p74 = scmp.eq.s32.totalorder %s31, 1
      %p75 = por %p73, %p74
      %p76 = scmp.ne.s32.totalorder %s65, %s66
      %p77 = scmp.eq.s32.totalorder %s31, 0
      %p78 = por %p76, %p77
      %p79 = scmp.ne.s32.totalorder %s65, %s66
      %p80 = scmp.eq.s32.totalorder %s32, 1
      %p81 = por %p79, %p80
      %p83 = scmp.ne.s32.totalorder %s66, %s82
      %p84 = scmp.eq.s32.totalorder %s32, 0
      %p85 = por %p83, %p84
      %s87 = sadd.s32 %s86, 1
      %p90 = scmp.eq.s32.totalorder %s26, 1
      %p91 = scmp.ne.s32.totalorder %s86, %s88
      %p92 = scmp.eq.s32.totalorder %s26, 0
      %p93 = por %p91, %p92
      %p94 = scmp.ne.s32.totalorder %s86, %s88
      %p95 = scmp.eq.s32.totalorder %s31, 1
      %p96 = por %p94, %p95
      %p97 = scmp.ne.s32.totalorder %s88, %s89
      %p98 = scmp.eq.s32.totalorder %s31, 0
      %p99 = por %p97, %p98
      %p100 = scmp.ne.s32.totalorder %s88, %s89
      %p101 = scmp.eq.s32.totalorder %s32, 1
      %p102 = por %p100, %p101
      %p104 = scmp.ne.s32.totalorder %s89, %s103
      %p105 = scmp.eq.s32.totalorder %s32, 0
      %p106 = por %p104, %p105
      %s108 = sadd.s32 %s107, 1
      %p111 = scmp.eq.s32.totalorder %s26, 1
      %p112 = scmp.ne.s32.totalorder %s107, %s109
      %p113 = scmp.eq.s32.totalorder %s26, 0
      %p114 = por %p112, %p113
      %p115 = scmp.ne.s32.totalorder %s107, %s109
      %p116 = scmp.eq.s32.totalorder %s31, 1
      %p117 = por %p115, %p116
      %p118 = scmp.ne.s32.totalorder %s109, %s110
      %p119 = scmp.eq.s32.totalorder %s31, 0
      %p120 = por %p118, %p119
      %p121 = scmp.ne.s32.totalorder %s109, %s110
      %p122 = scmp.eq.s32.totalorder %s32, 1
      %p123 = por %p121, %p122
      %p125 = scmp.ne.s32.totalorder %s110, %s124
      %p126 = scmp.eq.s32.totalorder %s32, 0
      %p127 = por %p125, %p126
      %s129 = sadd.s32 %s128, 1
      %p132 = scmp.eq.s32.totalorder %s26, 1
      %p133 = scmp.ne.s32.totalorder %s128, %s130
      %p134 = scmp.eq.s32.totalorder %s26, 0
      %p135 = por %p133, %p134
      %p136 = scmp.ne.s32.totalorder %s128, %s130
      %p137 = scmp.eq.s32.totalorder %s31, 1
      %p138 = por %p136, %p137
      %p139 = scmp.ne.s32.totalorder %s130, %s131
      %p140 = scmp.eq.s32.totalorder %s31, 0
      %p141 = por %p139, %p140
      %p142 = scmp.ne.s32.totalorder %s130, %s131
      %p143 = scmp.eq.s32.totalorder %s32, 1
      %p144 = por %p142, %p143
      %p146 = scmp.ne.s32.totalorder %s131, %s145
      %p147 = scmp.eq.s32.totalorder %s32, 0
      %p148 = por %p146, %p147
      %s150 = sadd.s32 %s149, 1
      %p153 = scmp.eq.s32.totalorder %s26, 1
      %p154 = scmp.ne.s32.totalorder %s149, %s151
      %p155 = scmp.eq.s32.totalorder %s26, 0
      %p156 = por %p154, %p155
      %p157 = scmp.ne.s32.totalorder %s149, %s151
      %p158 = scmp.eq.s32.totalorder %s31, 1
      %p159 = por %p157, %p158
      %p160 = scmp.ne.s32.totalorder %s151, %s152
      %p161 = scmp.eq.s32.totalorder %s31, 0
      %p162 = por %p160, %p161
      %p163 = scmp.ne.s32.totalorder %s151, %s152
      %p164 = scmp.eq.s32.totalorder %s32, 1
      %p165 = por %p163, %p164
      %p167 = scmp.ne.s32.totalorder %s152, %s166
      %p168 = scmp.eq.s32.totalorder %s32, 0
      %p169 = por %p167, %p168
      %s171 = sadd.s32 %s170, 1
      %p174 = scmp.eq.s32.totalorder %s26, 1
      %p175 = scmp.ne.s32.totalorder %s170, %s172
      %p176 = scmp.eq.s32.totalorder %s26, 0
      %p177 = por %p175, %p176
      %p178 = scmp.ne.s32.totalorder %s170, %s172
      %p179 = scmp.eq.s32.totalorder %s31, 1
      %p180 = por %p178, %p179
      %p181 = scmp.ne.s32.totalorder %s172, %s173
      %p182 = scmp.eq.s32.totalorder %s31, 0
      %p183 = por %p181, %p182
      %p184 = scmp.ne.s32.totalorder %s172, %s173
      %p185 = scmp.eq.s32.totalorder %s32, 1
      %p186 = por %p184, %p185
      %p188 = scmp.ne.s32.totalorder %s173, %s187
      %p189 = scmp.eq.s32.totalorder %s32, 0
      %p190 = por %p188, %p189
      %s192 = sadd.s32 %s191, 1
      %p195 = scmp.eq.s32.totalorder %s26, 1
      %p196 = scmp.ne.s32.totalorder %s191, %s193
      %p197 = scmp.eq.s32.totalorder %s26, 0
      %p198 = por %p196, %p197
      %p199 = scmp.ne.s32.totalorder %s191, %s193
      %p200 = scmp.eq.s32.totalorder %s31, 1
      %p201 = por %p199, %p200
      %p202 = scmp.ne.s32.totalorder %s193, %s194
      %p203 = scmp.eq.s32.totalorder %s31, 0
      %p204 = por %p202, %p203
      %p205 = scmp.ne.s32.totalorder %s193, %s194
      %p206 = scmp.eq.s32.totalorder %s32, 1
      %p207 = por %p205, %p206
      %p209 = scmp.ne.s32.totalorder %s194, %s208
      %p210 = scmp.eq.s32.totalorder %s32, 0
      %p211 = por %p209, %p210
      %s213 = sadd.s32 %s212, 1
      %p216 = scmp.eq.s32.totalorder %s26, 1
      %p217 = scmp.ne.s32.totalorder %s212, %s214
      %p218 = scmp.eq.s32.totalorder %s26, 0
      %p219 = por %p217, %p218
      %p220 = scmp.ne.s32.totalorder %s212, %s214
      %p221 = scmp.eq.s32.totalorder %s31, 1
      %p222 = por %p220, %p221
      %p223 = scmp.ne.s32.totalorder %s214, %s215
      %p224 = scmp.eq.s32.totalorder %s31, 0
      %p225 = por %p223, %p224
      %p226 = scmp.ne.s32.totalorder %s214, %s215
      %p227 = scmp.eq.s32.totalorder %s32, 1
      %p228 = por %p226, %p227
      %p230 = scmp.ne.s32.totalorder %s215, %s229
      %p231 = scmp.eq.s32.totalorder %s32, 0
      %p232 = por %p230, %p231
      %s234 = sadd.s32 %s233, 1
      %p237 = scmp.eq.s32.totalorder %s26, 1
      %p238 = scmp.ne.s32.totalorder %s233, %s235
      %p239 = scmp.eq.s32.totalorder %s26, 0
      %p240 = por %p238, %p239
      %p241 = scmp.ne.s32.totalorder %s233, %s235
      %p242 = scmp.eq.s32.totalorder %s31, 1
      %p243 = por %p241, %p242
      %p244 = scmp.ne.s32.totalorder %s235, %s236
      %p245 = scmp.eq.s32.totalorder %s31, 0
      %p246 = por %p244, %p245
      %p247 = scmp.ne.s32.totalorder %s235, %s236
      %p248 = scmp.eq.s32.totalorder %s32, 1
      %p249 = por %p247, %p248
      %p251 = scmp.ne.s32.totalorder %s236, %s250
      %p252 = scmp.eq.s32.totalorder %s32, 0
      %p253 = por %p251, %p252
      %s254 = ssub.s32 %s26, %s33
      %p255 = scmp.eq.s32.totalorder %s254, 0
      %s257 = sadd.s32 %s256, 1
      %s258 = scalar_select %p255, %s256, %s257
      %p261 = pneg %p255
      %p262 = scmp.eq.s32.totalorder %s26, 1
      %p263 = por %p261, %p262
      %p264 = scmp.ne.s32.totalorder %s256, %s259
      %p265 = scmp.eq.s32.totalorder %s26, 0
      %p266 = por %p264, %p265
      %p267 = scmp.ne.s32.totalorder %s256, %s259
      %p268 = scmp.eq.s32.totalorder %s31, 1
      %p269 = por %p267, %p268
      %p270 = scmp.ne.s32.totalorder %s259, %s260
      %p271 = scmp.eq.s32.totalorder %s31, 0
      %p272 = por %p270, %p271
      %p273 = scmp.ne.s32.totalorder %s259, %s260
      %p274 = scmp.eq.s32.totalorder %s32, 1
      %p275 = por %p273, %p274
      %p277 = scmp.ne.s32.totalorder %s260, %s276
      %p278 = scmp.eq.s32.totalorder %s32, 0
      %p279 = por %p277, %p278
      %p280 = scmp.le.s32.totalorder 1, %s26
      %p281 = scmp.lt.s32.totalorder %s26, 3
      %p282 = pnand %p280, %p281
      %p283 = pneg %p282
      // Predicated region
      $region9: #{tpu_custom_call.1} parent=5 // pred_check
        _
      $region10: #{tpu_custom_call.1} parent=5 // pred_check_branch
        %285 = sbr.rel (%p282) target = $region12
      $region11: #{tpu_custom_call.1} parent=5 // pred_region
        %s286 = ssub.s32 %s26, 1
        // Predicated region
        $region13: #{tpu_custom_call.1} parent=11 // pred_check
          %p287 = pneg %p99
        $region14: #{tpu_custom_call.1} parent=11 // pred_check_branch
          %289 = sbr.rel (%p287) target = $region16
        $region15: #{tpu_custom_call.1} parent=11 // pred_region
          %291 = vsyncadd [#allocation6], 0
          %s292 = sshll.u32 %s2, 4
          %s293 = int_to_ptr.hbm [resolvable:$true] %s292
          %s294 = sshll.u32 [#allocation7], 4
          %s295 = int_to_ptr.vmem [resolvable:$true] %s294
          %300 = dma.hbm_to_vmem [thread:$0]  %s293, 512, %s295, [#allocation6], 128, 128, 8
        $region16: #{tpu_custom_call.1} parent=11 // pred_fallthru
          _
        // Predicated region
        $region17: #{tpu_custom_call.1} parent=11 // pred_check
          %p301 = pneg %p120
        $region18: #{tpu_custom_call.1} parent=11 // pred_check_branch
          %303 = sbr.rel (%p301) target = $region20
        $region19: #{tpu_custom_call.1} parent=11 // pred_region
          _
        $region20: #{tpu_custom_call.1} parent=11 // pred_fallthru
          _
        // Predicated region
        $region21: #{tpu_custom_call.1} parent=11 // pred_check
          %p304 = pneg %p141
        $region22: #{tpu_custom_call.1} parent=11 // pred_check_branch
          %306 = sbr.rel (%p304) target = $region24
        $region23: #{tpu_custom_call.1} parent=11 // pred_region
          %308 = vsyncadd [#allocation9], 0
          %s309 = sshll.u32 %s4, 4
          %s310 = int_to_ptr.hbm [resolvable:$true] %s309
          %s311 = sshll.u32 [#allocation8], 4
          %s312 = int_to_ptr.vmem [resolvable:$true] %s311
          %317 = dma.hbm_to_vmem [thread:$0]  %s310, 512, %s312, [#allocation9], 128, 128, 8
        $region24: #{tpu_custom_call.1} parent=11 // pred_fallthru
          _
        // Predicated region
        $region25: #{tpu_custom_call.1} parent=11 // pred_check
          %p318 = pneg %p162
        $region26: #{tpu_custom_call.1} parent=11 // pred_check_branch
          %320 = sbr.rel (%p318) target = $region28
        $region27: #{tpu_custom_call.1} parent=11 // pred_region
          _
        $region28: #{tpu_custom_call.1} parent=11 // pred_fallthru
          _
        // Predicated region
        $region29: #{tpu_custom_call.1} parent=11 // pred_check
          %p321 = pneg %p183
        $region30: #{tpu_custom_call.1} parent=11 // pred_check_branch
          %323 = sbr.rel (%p321) target = $region32
        $region31: #{tpu_custom_call.1} parent=11 // pred_region
          %325 = vsyncadd [#allocation9], 0
          %s326 = sshll.u32 %s6, 4
          %s327 = int_to_ptr.hbm [resolvable:$true] %s326
          %s328 = sshll.u32 [#allocation10], 4
          %s329 = int_to_ptr.vmem [resolvable:$true] %s328
          %334 = dma.hbm_to_vmem [thread:$0]  %s327, 512, %s329, [#allocation9], 128, 128, 8
        $region32: #{tpu_custom_call.1} parent=11 // pred_fallthru
          _
        // Predicated region
        $region33: #{tpu_custom_call.1} parent=11 // pred_check
          %p335 = pneg %p204
        $region34: #{tpu_custom_call.1} parent=11 // pred_check_branch
          %337 = sbr.rel (%p335) target = $region36
        $region35: #{tpu_custom_call.1} parent=11 // pred_region
          _
        $region36: #{tpu_custom_call.1} parent=11 // pred_fallthru
          _
        // Predicated region
        $region37: #{tpu_custom_call.1} parent=11 // pred_check
          %p338 = pneg %p225
        $region38: #{tpu_custom_call.1} parent=11 // pred_check_branch
          %340 = sbr.rel (%p338) target = $region40
        $region39: #{tpu_custom_call.1} parent=11 // pred_region
          _
        $region40: #{tpu_custom_call.1} parent=11 // pred_fallthru
          _
        // Predicated region
        $region41: #{tpu_custom_call.1} parent=11 // pred_check
          %p341 = pneg %p246
        $region42: #{tpu_custom_call.1} parent=11 // pred_check_branch
          %343 = sbr.rel (%p341) target = $region44
        $region43: #{tpu_custom_call.1} parent=11 // pred_region
          _
        $region44: #{tpu_custom_call.1} parent=11 // pred_fallthru
          _
      $region12: #{tpu_custom_call.1} parent=5 // pred_fallthru
        _
      %p344 = scmp.lt.s32.totalorder %s26, 2
      // Predicated region
      $region45: #{tpu_custom_call.1} parent=5 // pred_check
        %p345 = pneg %p344
      $region46: #{tpu_custom_call.1} parent=5 // pred_check_branch
        %347 = sbr.rel (%p345) target = $region48
      $region47: #{tpu_custom_call.1} parent=5 // pred_region
        // Predicated region
        $region49: #{tpu_custom_call.1} parent=47 // pred_check
          %p348 = pneg %p46
        $region50: #{tpu_custom_call.1} parent=47 // pred_check_branch
          %350 = sbr.rel (%p348) target = $region52
        $region51: #{tpu_custom_call.1} parent=47 // pred_region
          %s351 = sand.u32 %s36, 1
          %s352 = scalar_lea.sflag [#allocation3], %s351
          %s353 = sand.u32 %s36, 1
          %s354 = smul.addr %s353, 8
          %s355 = scalar_lea.vmem [#allocation2], %s354
          %357 = vsyncadd %s352, 0
          %s358 = smul.addr %s26, 8
          %s359 = scalar_lea.hbm %s0, %s358
          %s361 = sshll.u32 %s359, 4
          %s362 = int_to_ptr.hbm [resolvable:$true] %s361
          %s363 = sshll.u32 %s355, 4
          %s364 = int_to_ptr.vmem [resolvable:$true] %s363
          %366 = dma.hbm_to_vmem [thread:$0]  %s362, 128, %s364, %s352
        $region52: #{tpu_custom_call.1} parent=47 // pred_fallthru
          _
        // Predicated region
        $region53: #{tpu_custom_call.1} parent=47 // pred_check
          %p367 = pneg %p72
        $region54: #{tpu_custom_call.1} parent=47 // pred_check_branch
          %369 = sbr.rel (%p367) target = $region56
        $region55: #{tpu_custom_call.1} parent=47 // pred_region
          %s370 = sand.u32 %s26, 1
          %s371 = scalar_lea.sflag [#allocation6], %s370
          %s372 = sand.u32 %s62, 1
          %s373 = smul.addr %s372, 8
          %s374 = scalar_lea.vmem [#allocation5], %s373
          %376 = vsyncadd %s371, 0
          %s377 = smul.addr %s26, 8
          %s378 = scalar_lea.hbm %s1, %s377
          %s380 = sshll.u32 %s378, 4
          %s381 = int_to_ptr.hbm [resolvable:$true] %s380
          %s382 = sshll.u32 %s374, 4
          %s383 = int_to_ptr.vmem [resolvable:$true] %s382
          %385 = dma.hbm_to_vmem [thread:$0]  %s381, 128, %s383, %s371
        $region56: #{tpu_custom_call.1} parent=47 // pred_fallthru
          _
      $region48: #{tpu_custom_call.1} parent=5 // pred_fallthru
        _
      %p386 = scmp.le.s32.totalorder 1, %s26
      %p387 = scmp.lt.s32.totalorder %s26, 3
      %p388 = pnand %p386, %p387
      %p389 = pneg %p388
      // Predicated region
      $region57: #{tpu_custom_call.1} parent=5 // pred_check
        _
      $region58: #{tpu_custom_call.1} parent=5 // pred_check_branch
        %391 = sbr.rel (%p388) target = $region60
      $region59: #{tpu_custom_call.1} parent=5 // pred_region
        %s392 = ssub.s32 %s26, 1
        %s393 = sand.u32 %s39, 1
        %s394 = scalar_lea.sflag [#allocation3], %s393
        %s395 = sand.u32 %s39, 1
        %s396 = smul.addr %s395, 8
        %s397 = scalar_lea.vmem [#allocation2], %s396
        // Predicated region
        $region61: #{tpu_custom_call.1} parent=59 // pred_check
          %p398 = pneg %p52
        $region62: #{tpu_custom_call.1} parent=59 // pred_check_branch
          %400 = sbr.rel (%p398) target = $region64
        $region63: #{tpu_custom_call.1} parent=59 // pred_region
          %402 = dma.done %s394, 128
        $region64: #{tpu_custom_call.1} parent=59 // pred_fallthru
          _
        %s403 = sand.u32 %s31, 1
        %s404 = scalar_lea.sflag [#allocation6], %s403
        %s405 = sand.u32 %s65, 1
        %s406 = smul.addr %s405, 8
        %s407 = scalar_lea.vmem [#allocation5], %s406
        // Predicated region
        $region65: #{tpu_custom_call.1} parent=59 // pred_check
          %p408 = pneg %p78
        $region66: #{tpu_custom_call.1} parent=59 // pred_check_branch
          %410 = sbr.rel (%p408) target = $region68
        $region67: #{tpu_custom_call.1} parent=59 // pred_region
          %412 = dma.done %s404, 128
        $region68: #{tpu_custom_call.1} parent=59 // pred_fallthru
          _
        // Predicated region
        $region69: #{tpu_custom_call.1} parent=59 // pred_check
          %p413 = pneg %p99
        $region70: #{tpu_custom_call.1} parent=59 // pred_check_branch
          %415 = sbr.rel (%p413) target = $region72
        $region71: #{tpu_custom_call.1} parent=59 // pred_region
          %417 = dma.done [#allocation6], 512
        $region72: #{tpu_custom_call.1} parent=59 // pred_fallthru
          _
        // Predicated region
        $region73: #{tpu_custom_call.1} parent=59 // pred_check
          %p418 = pneg %p141
        $region74: #{tpu_custom_call.1} parent=59 // pred_check_branch
          %420 = sbr.rel (%p418) target = $region76
        $region75: #{tpu_custom_call.1} parent=59 // pred_region
          %422 = dma.done [#allocation9], 512
        $region76: #{tpu_custom_call.1} parent=59 // pred_fallthru
          _
        // Predicated region
        $region77: #{tpu_custom_call.1} parent=59 // pred_check
          %p423 = pneg %p183
        $region78: #{tpu_custom_call.1} parent=59 // pred_check_branch
          %425 = sbr.rel (%p423) target = $region80
        $region79: #{tpu_custom_call.1} parent=59 // pred_region
          %427 = dma.done [#allocation9], 512
        $region80: #{tpu_custom_call.1} parent=59 // pred_fallthru
          _
        %s428 = sand.u32 %s39, 1
        %s429 = scalar_lea.sflag [#allocation3], %s428
        %s430 = sand.u32 %s39, 1
        %s431 = smul.addr %s430, 8
        %s432 = scalar_lea.vmem [#allocation2], %s431
        %p433 = pneg %p52
        %p434 = pneg %p49
        %s435 = sand.u32 %s31, 1
        %s436 = scalar_lea.sflag [#allocation6], %s435
        %s437 = sand.u32 %s65, 1
        %s438 = smul.addr %s437, 8
        %s439 = scalar_lea.vmem [#allocation5], %s438
        %p440 = pneg %p78
        %p441 = pneg %p75
        %p442 = pneg %p99
        %p443 = pneg %p96
        %p444 = pneg %p120
        %p445 = pneg %p117
        %p446 = pneg %p141
        %p447 = pneg %p138
        %p448 = pneg %p162
        %p449 = pneg %p159
        %p450 = pneg %p183
        %p451 = pneg %p180
        %p452 = pneg %p204
        %p453 = pneg %p201
        %p454 = pneg %p225
        %p455 = pneg %p222
        %p456 = pneg %p246
        %p457 = pneg %p243
        %p458 = pneg %p272
        %p459 = pneg %p269
        %s460 = sand.u32 %s259, 1
        %s461 = scalar_lea.sflag [#allocation4], %s460
        %s462 = sand.u32 %s259, 1
        %s463 = smul.addr %s462, 8
        %s464 = scalar_lea.vmem [#allocation11], %s463
        %v465 = vld [vmem:[%s397] sm:$0xff]
        %v466 = vld [vmem:[%s407] sm:$0xff]
        %v467 = vadd.f32 %v465, %v466
        %v468 = vld [vmem:[#allocation7] sm:$0xff]
        %v469 = vld [vmem:[#allocation7 + $0x8] sm:$0xff]
        %v470 = vld [vmem:[#allocation7 + $0x10] sm:$0xff]
        %v471 = vld [vmem:[#allocation7 + $0x18] sm:$0xff]
        %v472 = vld [vmem:[%s3] sm:$0x1]
        %v474 = vperm.slane %v472, 0
        %vm476 = vcmask 261120
        %v478 = vsel %vm476, %v467, 0
        %480 = vmatpush.msra.mxu0 0.0
        %481 = vmatpush.msra.mxu0 0.0
        %482 = vmatpush.msra.mxu0 0.0
        %483 = vmatpush.msra.mxu0 0.0
        %484 = vmatpush.msra.mxu0 0.0
        %485 = vmatpush.msra.mxu0 0.0
        %486 = vmatpush.msra.mxu0 0.0
        %487 = vmatpush.msra.mxu0 0.0
        %488 = vmatpush.msra.mxu0 0.0
        %489 = vmatpush.msra.mxu0 0.0
        %490 = vmatpush.msra.mxu0 0.0
        %491 = vmatpush.msra.mxu0 0.0
        %492 = vmatpush.msra.mxu0 %v471
        %493 = vmatpush.msra.mxu0 %v470
        %494 = vmatpush.msra.mxu0 %v469
        %495 = vmatpush.msra.mxu0 %v468
        %496 = vmatmul.f32.gmra.mxu0 %v478
        %v497 = vpop.f32.mrf.mxu0
        %v498 = vadd.f32 %v474, %v497
        %499 = vdwg.mxu0
        %v500 = vld [vmem:[#allocation8] sm:$0xff]
        %v501 = vld [vmem:[#allocation8 + $0x8] sm:$0xff]
        %v502 = vld [vmem:[#allocation8 + $0x10] sm:$0xff]
        %v503 = vld [vmem:[#allocation8 + $0x18] sm:$0xff]
        %v504 = vld [vmem:[%s5] sm:$0x1]
        %v506 = vperm.slane %v504, 0
        %v509 = vsel %vm476, %v465, 0
        %511 = vmatpush.msra.mxu0 0.0
        %512 = vmatpush.msra.mxu0 0.0
        %513 = vmatpush.msra.mxu0 0.0
        %514 = vmatpush.msra.mxu0 0.0
        %515 = vmatpush.msra.mxu0 0.0
        %516 = vmatpush.msra.mxu0 0.0
        %517 = vmatpush.msra.mxu0 0.0
        %518 = vmatpush.msra.mxu0 0.0
        %519 = vmatpush.msra.mxu0 0.0
        %520 = vmatpush.msra.mxu0 0.0
        %521 = vmatpush.msra.mxu0 0.0
        %522 = vmatpush.msra.mxu0 0.0
        %523 = vmatpush.msra.mxu0 %v503
        %524 = vmatpush.msra.mxu0 %v502
        %525 = vmatpush.msra.mxu0 %v501
        %526 = vmatpush.msra.mxu0 %v500
        %527 = vmatmul.f32.gmra.mxu0 %v509
        %v528 = vpop.f32.mrf.mxu0
        %v529 = vadd.f32 %v506, %v528
        %530 = vdwg.mxu0
        %532 = vrot.lane.b32.xlu0 %v498, 96
        %v533 = vpop.permute.xlu0 %532
        %vm534 = vcmask 64512
        %v535 = vsel %vm534, %v498, 0
        %v537 = vsel %vm534, %v533, 0
        %539 = vmatpush.xpose.msra.mxu0 0.0
        %540 = vmatpush.xpose.msra.mxu0 0.0
        %541 = vmatpush.xpose.msra.mxu0 0.0
        %542 = vmatpush.xpose.msra.mxu0 0.0
        %543 = vmatpush.xpose.msra.mxu0 0.0
        %544 = vmatpush.xpose.msra.mxu0 0.0
        %545 = vmatpush.xpose.msra.mxu0 0.0
        %546 = vmatpush.xpose.msra.mxu0 0.0
        %547 = vmatpush.xpose.msra.mxu0 0.0
        %548 = vmatpush.xpose.msra.mxu0 0.0
        %549 = vmatpush.xpose.msra.mxu0 0.0
        %550 = vmatpush.xpose.msra.mxu0 0.0
        %551 = vmatpush.xpose.msra.mxu0 0.0
        %552 = vmatpush.xpose.msra.mxu0 0.0
        %553 = vmatpush.xpose.msra.mxu0 0.0
        %554 = vmatpush.xpose.msra.mxu0 %v537
        %555 = vmatmul.f32.gmra.mxu0 %v535
        %v556 = vpop.f32.mrf.mxu0
        %v557 = vadd.f32 0.0, %v556
        %558 = vdwg.mxu0
        %v559 = vsel %vm534, %v557, -inf
        %560 = vmax.xlane.f32.xlu0 %v559
        %v561 = vpop.xlane.xlu0 %560
        %v562 = vsub.f32 %v557, %v561
        %v563 = vmul.f32 %v562, 1.442695
        %v564 = vpow.pop %v563
        %v565 = vsel %vm534, %v564, 0.0
        %566 = vadd.xlane.f32.xlu0 %v565
        %v567 = vpop.xlane.xlu0 %566
        %v568 = vrcp.pop %v567
        %v569 = vmul.f32 %v567, %v568
        %v570 = vsub.f32 1.0, %v569
        %v571 = vmul.f32 %v568, %v570
        %v572 = vadd.f32 %v568, %v571
        %vm573 = vweird.f32 %v567
        %vm574 = vweird.f32 %v568
        %vm575 = vmor %vm573, %vm574
        %v576 = vsel %vm575, %v568, %v572
        %v577 = vand.u32 2147483647, %v567
        %vm578 = vcmp.eq.f32.partialorder %v577, 8.507059e+37
        %v579 = vand.u32 %v567, 2147483648
        %v580 = vor.u32 1.1754944e-38, %v579
        %v581 = vsel %vm578, %v580, %v576
        %v582 = vmul.f32 %v564, %v581
        %v584 = vsel %vm534, %v582, 0
        %586 = vmatpush.msra.mxu0 0.0
        %587 = vmatpush.msra.mxu0 0.0
        %588 = vmatpush.msra.mxu0 0.0
        %589 = vmatpush.msra.mxu0 0.0
        %590 = vmatpush.msra.mxu0 0.0
        %591 = vmatpush.msra.mxu0 0.0
        %592 = vmatpush.msra.mxu0 0.0
        %593 = vmatpush.msra.mxu0 0.0
        %594 = vmatpush.msra.mxu0 0.0
        %595 = vmatpush.msra.mxu0 0.0
        %596 = vmatpush.msra.mxu0 0.0
        %597 = vmatpush.msra.mxu0 0.0
        %598 = vmatpush.msra.mxu0 0.0
        %599 = vmatpush.msra.mxu0 0.0
        %600 = vmatpush.msra.mxu0 0.0
        %601 = vmatpush.msra.mxu0 %v529
        %602 = vmatmul.f32.gmra.mxu0 %v584
        %v603 = vpop.f32.mrf.mxu0
        %v604 = vadd.f32 0.0, %v603
        %605 = vdwg.mxu0
        %v606 = vld [vmem:[#allocation10] sm:$0xff]
        %607 = vrot.lane.b32.xlu0 %v498, 120
        %v608 = vpop.permute.xlu0 %607
        %609 = vrot.lane.b32.xlu0 %v498, 88
        %v610 = vpop.permute.xlu0 %609
        %v611 = vsel %vm534, %v608, 0
        %v613 = vsel %vm534, %v610, 0
        %615 = vmatpush.xpose.msra.mxu0 0.0
        %616 = vmatpush.xpose.msra.mxu0 0.0
        %617 = vmatpush.xpose.msra.mxu0 0.0
        %618 = vmatpush.xpose.msra.mxu0 0.0
        %619 = vmatpush.xpose.msra.mxu0 0.0
        %620 = vmatpush.xpose.msra.mxu0 0.0
        %621 = vmatpush.xpose.msra.mxu0 0.0
        %622 = vmatpush.xpose.msra.mxu0 0.0
        %623 = vmatpush.xpose.msra.mxu0 0.0
        %624 = vmatpush.xpose.msra.mxu0 0.0
        %625 = vmatpush.xpose.msra.mxu0 0.0
        %626 = vmatpush.xpose.msra.mxu0 0.0
        %627 = vmatpush.xpose.msra.mxu0 0.0
        %628 = vmatpush.xpose.msra.mxu0 0.0
        %629 = vmatpush.xpose.msra.mxu0 0.0
        %630 = vmatpush.xpose.msra.mxu0 %v613
        %631 = vmatmul.f32.gmra.mxu0 %v611
        %v632 = vpop.f32.mrf.mxu0
        %v633 = vadd.f32 0.0, %v632
        %634 = vdwg.mxu0
        %v635 = vsel %vm534, %v633, -inf
        %636 = vmax.xlane.f32.xlu0 %v635
        %v637 = vpop.xlane.xlu0 %636
        %v638 = vsub.f32 %v633, %v637
        %v639 = vmul.f32 %v638, 1.442695
        %v640 = vpow.pop %v639
        %v641 = vsel %vm534, %v640, 0.0
        %642 = vadd.xlane.f32.xlu0 %v641
        %v643 = vpop.xlane.xlu0 %642
        %v644 = vrcp.pop %v643
        %v645 = vmul.f32 %v643, %v644
        %v646 = vsub.f32 1.0, %v645
        %v647 = vmul.f32 %v644, %v646
        %v648 = vadd.f32 %v644, %v647
        %vm649 = vweird.f32 %v643
        %vm650 = vweird.f32 %v644
        %vm651 = vmor %vm649, %vm650
        %v652 = vsel %vm651, %v644, %v648
        %v653 = vand.u32 2147483647, %v643
        %vm654 = vcmp.eq.f32.partialorder %v653, 8.507059e+37
        %v655 = vand.u32 %v643, 2147483648
        %v656 = vor.u32 1.1754944e-38, %v655
        %v657 = vsel %vm654, %v656, %v652
        %v658 = vmul.f32 %v640, %v657
        %660 = vrot.lane.b32.xlu0 %v529, 120
        %v661 = vpop.permute.xlu0 %660
        %v664 = vsel %vm534, %v658, 0
        %666 = vmatpush.msra.mxu0 0.0
        %667 = vmatpush.msra.mxu0 0.0
        %668 = vmatpush.msra.mxu0 0.0
        %669 = vmatpush.msra.mxu0 0.0
        %670 = vmatpush.msra.mxu0 0.0
        %671 = vmatpush.msra.mxu0 0.0
        %672 = vmatpush.msra.mxu0 0.0
        %673 = vmatpush.msra.mxu0 0.0
        %674 = vmatpush.msra.mxu0 0.0
        %675 = vmatpush.msra.mxu0 0.0
        %676 = vmatpush.msra.mxu0 0.0
        %677 = vmatpush.msra.mxu0 0.0
        %678 = vmatpush.msra.mxu0 0.0
        %679 = vmatpush.msra.mxu0 0.0
        %680 = vmatpush.msra.mxu0 0.0
        %681 = vmatpush.msra.mxu0 %v661
        %682 = vmatmul.f32.gmra.mxu0 %v664
        %v683 = vpop.f32.mrf.mxu0
        %v684 = vadd.f32 0.0, %v683
        %685 = vdwg.mxu0
        %s686 = scalar_lea.vmem [#allocation10], 8
        %v687 = vld [vmem:[%s686] sm:$0xff]
        %v689 = vsel %vm534, %v684, 0
        %691 = vmatpush.msra.mxu0 0.0
        %692 = vmatpush.msra.mxu0 0.0
        %693 = vmatpush.msra.mxu0 0.0
        %694 = vmatpush.msra.mxu0 0.0
        %695 = vmatpush.msra.mxu0 0.0
        %696 = vmatpush.msra.mxu0 0.0
        %697 = vmatpush.msra.mxu0 0.0
        %698 = vmatpush.msra.mxu0 0.0
        %699 = vmatpush.msra.mxu0 0.0
        %700 = vmatpush.msra.mxu0 0.0
        %701 = vmatpush.msra.mxu0 0.0
        %702 = vmatpush.msra.mxu0 0.0
        %703 = vmatpush.msra.mxu0 0.0
        %704 = vmatpush.msra.mxu0 0.0
        %705 = vmatpush.msra.mxu0 0.0
        %706 = vmatpush.msra.mxu0 %v687
        %707 = vmatmul.f32.gmra.mxu0 %v689
        %v708 = vpop.f32.mrf.mxu0
        %v709 = vadd.f32 0.0, %v708
        %710 = vdwg.mxu0
        %v712 = vsel %vm534, %v604, 0
        %714 = vmatpush.msra.mxu0 0.0
        %715 = vmatpush.msra.mxu0 0.0
        %716 = vmatpush.msra.mxu0 0.0
        %717 = vmatpush.msra.mxu0 0.0
        %718 = vmatpush.msra.mxu0 0.0
        %719 = vmatpush.msra.mxu0 0.0
        %720 = vmatpush.msra.mxu0 0.0
        %721 = vmatpush.msra.mxu0 0.0
        %722 = vmatpush.msra.mxu0 0.0
        %723 = vmatpush.msra.mxu0 0.0
        %724 = vmatpush.msra.mxu0 0.0
        %725 = vmatpush.msra.mxu0 0.0
        %726 = vmatpush.msra.mxu0 0.0
        %727 = vmatpush.msra.mxu0 0.0
        %728 = vmatpush.msra.mxu0 0.0
        %729 = vmatpush.msra.mxu0 %v606
        %730 = vmatmul.f32.gmra.mxu0 %v712
        %v731 = vpop.f32.mrf.mxu0
        %v732 = vadd.f32 %v709, %v731
        %733 = vdwg.mxu0
        %734 = vrot.lane.b32.xlu0 %v498, 112
        %v735 = vpop.permute.xlu0 %734
        %736 = vrot.lane.b32.xlu0 %v498, 80
        %v737 = vpop.permute.xlu0 %736
        %v738 = vsel %vm534, %v735, 0
        %v740 = vsel %vm534, %v737, 0
        %742 = vmatpush.xpose.msra.mxu0 0.0
        %743 = vmatpush.xpose.msra.mxu0 0.0
        %744 = vmatpush.xpose.msra.mxu0 0.0
        %745 = vmatpush.xpose.msra.mxu0 0.0
        %746 = vmatpush.xpose.msra.mxu0 0.0
        %747 = vmatpush.xpose.msra.mxu0 0.0
        %748 = vmatpush.xpose.msra.mxu0 0.0
        %749 = vmatpush.xpose.msra.mxu0 0.0
        %750 = vmatpush.xpose.msra.mxu0 0.0
        %751 = vmatpush.xpose.msra.mxu0 0.0
        %752 = vmatpush.xpose.msra.mxu0 0.0
        %753 = vmatpush.xpose.msra.mxu0 0.0
        %754 = vmatpush.xpose.msra.mxu0 0.0
        %755 = vmatpush.xpose.msra.mxu0 0.0
        %756 = vmatpush.xpose.msra.mxu0 0.0
        %757 = vmatpush.xpose.msra.mxu0 %v740
        %758 = vmatmul.f32.gmra.mxu0 %v738
        %v759 = vpop.f32.mrf.mxu0
        %v760 = vadd.f32 0.0, %v759
        %761 = vdwg.mxu0
        %v762 = vsel %vm534, %v760, -inf
        %763 = vmax.xlane.f32.xlu0 %v762
        %v764 = vpop.xlane.xlu0 %763
        %v765 = vsub.f32 %v760, %v764
        %v766 = vmul.f32 %v765, 1.442695
        %v767 = vpow.pop %v766
        %v768 = vsel %vm534, %v767, 0.0
        %769 = vadd.xlane.f32.xlu0 %v768
        %v770 = vpop.xlane.xlu0 %769
        %v771 = vrcp.pop %v770
        %v772 = vmul.f32 %v770, %v771
        %v773 = vsub.f32 1.0, %v772
        %v774 = vmul.f32 %v771, %v773
        %v775 = vadd.f32 %v771, %v774
        %vm776 = vweird.f32 %v770
        %vm777 = vweird.f32 %v771
        %vm778 = vmor %vm776, %vm777
        %v779 = vsel %vm778, %v771, %v775
        %v780 = vand.u32 2147483647, %v770
        %vm781 = vcmp.eq.f32.partialorder %v780, 8.507059e+37
        %v782 = vand.u32 %v770, 2147483648
        %v783 = vor.u32 1.1754944e-38, %v782
        %v784 = vsel %vm781, %v783, %v779
        %v785 = vmul.f32 %v767, %v784
        %786 = vrot.lane.b32.xlu0 %v529, 112
        %v787 = vpop.permute.xlu0 %786
        %v790 = vsel %vm534, %v785, 0
        %792 = vmatpush.msra.mxu0 0.0
        %793 = vmatpush.msra.mxu0 0.0
        %794 = vmatpush.msra.mxu0 0.0
        %795 = vmatpush.msra.mxu0 0.0
        %796 = vmatpush.msra.mxu0 0.0
        %797 = vmatpush.msra.mxu0 0.0
        %798 = vmatpush.msra.mxu0 0.0
        %799 = vmatpush.msra.mxu0 0.0
        %800 = vmatpush.msra.mxu0 0.0
        %801 = vmatpush.msra.mxu0 0.0
        %802 = vmatpush.msra.mxu0 0.0
        %803 = vmatpush.msra.mxu0 0.0
        %804 = vmatpush.msra.mxu0 0.0
        %805 = vmatpush.msra.mxu0 0.0
        %806 = vmatpush.msra.mxu0 0.0
        %807 = vmatpush.msra.mxu0 %v787
        %808 = vmatmul.f32.gmra.mxu0 %v790
        %v809 = vpop.f32.mrf.mxu0
        %v810 = vadd.f32 0.0, %v809
        %811 = vdwg.mxu0
        %s812 = scalar_lea.vmem [#allocation10], 16
        %v813 = vld [vmem:[%s812] sm:$0xff]
        %v815 = vsel %vm534, %v810, 0
        %817 = vmatpush.msra.mxu0 0.0
        %818 = vmatpush.msra.mxu0 0.0
        %819 = vmatpush.msra.mxu0 0.0
        %820 = vmatpush.msra.mxu0 0.0
        %821 = vmatpush.msra.mxu0 0.0
        %822 = vmatpush.msra.mxu0 0.0
        %823 = vmatpush.msra.mxu0 0.0
        %824 = vmatpush.msra.mxu0 0.0
        %825 = vmatpush.msra.mxu0 0.0
        %826 = vmatpush.msra.mxu0 0.0
        %827 = vmatpush.msra.mxu0 0.0
        %828 = vmatpush.msra.mxu0 0.0
        %829 = vmatpush.msra.mxu0 0.0
        %830 = vmatpush.msra.mxu0 0.0
        %831 = vmatpush.msra.mxu0 0.0
        %832 = vmatpush.msra.mxu0 %v813
        %833 = vmatmul.f32.gmra.mxu0 %v815
        %v834 = vpop.f32.mrf.mxu0
        %v835 = vadd.f32 0.0, %v834
        %836 = vdwg.mxu0
        %v837 = vadd.f32 %v732, %v835
        %838 = vrot.lane.b32.xlu0 %v498, 104
        %v839 = vpop.permute.xlu0 %838
        %840 = vrot.lane.b32.xlu0 %v498, 72
        %v841 = vpop.permute.xlu0 %840
        %v842 = vsel %vm534, %v839, 0
        %v844 = vsel %vm534, %v841, 0
        %846 = vmatpush.xpose.msra.mxu0 0.0
        %847 = vmatpush.xpose.msra.mxu0 0.0
        %848 = vmatpush.xpose.msra.mxu0 0.0
        %849 = vmatpush.xpose.msra.mxu0 0.0
        %850 = vmatpush.xpose.msra.mxu0 0.0
        %851 = vmatpush.xpose.msra.mxu0 0.0
        %852 = vmatpush.xpose.msra.mxu0 0.0
        %853 = vmatpush.xpose.msra.mxu0 0.0
        %854 = vmatpush.xpose.msra.mxu0 0.0
        %855 = vmatpush.xpose.msra.mxu0 0.0
        %856 = vmatpush.xpose.msra.mxu0 0.0
        %857 = vmatpush.xpose.msra.mxu0 0.0
        %858 = vmatpush.xpose.msra.mxu0 0.0
        %859 = vmatpush.xpose.msra.mxu0 0.0
        %860 = vmatpush.xpose.msra.mxu0 0.0
        %861 = vmatpush.xpose.msra.mxu0 %v844
        %862 = vmatmul.f32.gmra.mxu0 %v842
        %v863 = vpop.f32.mrf.mxu0
        %v864 = vadd.f32 0.0, %v863
        %865 = vdwg.mxu0
        %v866 = vsel %vm534, %v864, -inf
        %867 = vmax.xlane.f32.xlu0 %v866
        %v868 = vpop.xlane.xlu0 %867
        %v869 = vsub.f32 %v864, %v868
        %v870 = vmul.f32 %v869, 1.442695
        %v871 = vpow.pop %v870
        %v872 = vsel %vm534, %v871, 0.0
        %873 = vadd.xlane.f32.xlu0 %v872
        %v874 = vpop.xlane.xlu0 %873
        %v875 = vrcp.pop %v874
        %v876 = vmul.f32 %v874, %v875
        %v877 = vsub.f32 1.0, %v876
        %v878 = vmul.f32 %v875, %v877
        %v879 = vadd.f32 %v875, %v878
        %vm880 = vweird.f32 %v874
        %vm881 = vweird.f32 %v875
        %vm882 = vmor %vm880, %vm881
        %v883 = vsel %vm882, %v875, %v879
        %v884 = vand.u32 2147483647, %v874
        %vm885 = vcmp.eq.f32.partialorder %v884, 8.507059e+37
        %v886 = vand.u32 %v874, 2147483648
        %v887 = vor.u32 1.1754944e-38, %v886
        %v888 = vsel %vm885, %v887, %v883
        %v889 = vmul.f32 %v871, %v888
        %890 = vrot.lane.b32.xlu0 %v529, 104
        %v891 = vpop.permute.xlu0 %890
        %v894 = vsel %vm534, %v889, 0
        %896 = vmatpush.msra.mxu0 0.0
        %897 = vmatpush.msra.mxu0 0.0
        %898 = vmatpush.msra.mxu0 0.0
        %899 = vmatpush.msra.mxu0 0.0
        %900 = vmatpush.msra.mxu0 0.0
        %901 = vmatpush.msra.mxu0 0.0
        %902 = vmatpush.msra.mxu0 0.0
        %903 = vmatpush.msra.mxu0 0.0
        %904 = vmatpush.msra.mxu0 0.0
        %905 = vmatpush.msra.mxu0 0.0
        %906 = vmatpush.msra.mxu0 0.0
        %907 = vmatpush.msra.mxu0 0.0
        %908 = vmatpush.msra.mxu0 0.0
        %909 = vmatpush.msra.mxu0 0.0
        %910 = vmatpush.msra.mxu0 0.0
        %911 = vmatpush.msra.mxu0 %v891
        %912 = vmatmul.f32.gmra.mxu0 %v894
        %v913 = vpop.f32.mrf.mxu0
        %v914 = vadd.f32 0.0, %v913
        %915 = vdwg.mxu0
        %s916 = scalar_lea.vmem [#allocation10], 24
        %v917 = vld [vmem:[%s916] sm:$0xff]
        %v919 = vsel %vm534, %v914, 0
        %921 = vmatpush.msra.mxu0 0.0
        %922 = vmatpush.msra.mxu0 0.0
        %923 = vmatpush.msra.mxu0 0.0
        %924 = vmatpush.msra.mxu0 0.0
        %925 = vmatpush.msra.mxu0 0.0
        %926 = vmatpush.msra.mxu0 0.0
        %927 = vmatpush.msra.mxu0 0.0
        %928 = vmatpush.msra.mxu0 0.0
        %929 = vmatpush.msra.mxu0 0.0
        %930 = vmatpush.msra.mxu0 0.0
        %931 = vmatpush.msra.mxu0 0.0
        %932 = vmatpush.msra.mxu0 0.0
        %933 = vmatpush.msra.mxu0 0.0
        %934 = vmatpush.msra.mxu0 0.0
        %935 = vmatpush.msra.mxu0 0.0
        %936 = vmatpush.msra.mxu0 %v917
        %937 = vmatmul.f32.gmra.mxu0 %v919
        %v938 = vpop.f32.mrf.mxu0
        %v939 = vadd.f32 0.0, %v938
        %940 = vdwg.mxu0
        %v941 = vadd.f32 %v837, %v939
        %v942 = vld [vmem:[%s7] sm:$0x1]
        %v944 = vperm.slane %v942, 0
        %v946 = vadd.f32 %v941, %v944
        %v947 = vadd.f32 %v465, %v946
        %v948 = vsel %vm476, %v947, 0.0
        %949 = vadd.xlane.f32.xlu0 %v948
        %v950 = vpop.xlane.xlu0 %949
        %v951 = vrcp.pop 32.0
        %v952 = vmul.f32 32.0, %v951
        %v953 = vsub.f32 1.0, %v952
        %v954 = vmul.f32 %v951, %v953
        %v955 = vadd.f32 %v951, %v954
        %vm956 = vweird.f32 %v951
        %v957 = vsel %vm956, %v951, %v955
        %v958 = vmul.f32 %v950, %v957
        %v959 = vsub.f32 %v947, %v958
        %v960 = vmul.f32 %v959, %v959
        %v961 = vsel %vm476, %v960, 0.0
        %962 = vadd.xlane.f32.xlu0 %v961
        %v963 = vpop.xlane.xlu0 %962
        %v964 = vmul.f32 %v963, %v957
        %v965 = vadd.f32 %v964, 1e-05
        %v966 = vrsqrt.pop %v965
        %v967 = vmul.f32 %v966, %v965
        %v968 = vmul.f32 %v967, %v966
        %v969 = vmul.f32 0.5, %v968
        %v970 = vsub.f32 1.5, %v969
        %v971 = vmul.f32 %v966, %v970
        %vm972 = vweird.f32 %v965
        %vm973 = vweird.f32 %v966
        %vm974 = vmor %vm972, %vm973
        %v975 = vsel %vm974, %v966, %v971
        %v976 = vmul.f32 %v959, %v975
        %v977 = vld [vmem:[%s8] sm:$0x1]
        %v979 = vperm.slane %v977, 0
        %v981 = vmul.f32 %v976, %v979
        %v982 = vld [vmem:[%s9] sm:$0x1]
        %v984 = vperm.slane %v982, 0
        %v986 = vadd.f32 %v981, %v984
        %987 = vst.msk [vmem:[%s464] sm:$0xff] %vm476, %v986
        %s988 = sand.u32 %s259, 1
        %s989 = scalar_lea.sflag [#allocation4], %s988
        %s990 = sand.u32 %s259, 1
        %s991 = smul.addr %s990, 8
        %s992 = scalar_lea.vmem [#allocation11], %s991
        // Predicated region
        $region81: #{tpu_custom_call.1} parent=59 // pred_check
          %p993 = pneg %p269
        $region82: #{tpu_custom_call.1} parent=59 // pred_check_branch
          %995 = sbr.rel (%p993) target = $region84
        $region83: #{tpu_custom_call.1} parent=59 // pred_region
          %997 = vsyncadd %s989, 0
          %s998 = smul.addr %s31, 8
          %s999 = scalar_lea.hbm %s10, %s998
          %s1001 = sshll.u32 %s992, 4
          %s1002 = int_to_ptr.vmem [resolvable:$true] %s1001
          %s1003 = sshll.u32 %s999, 4
          %s1004 = int_to_ptr.hbm [resolvable:$true] %s1003
          %1006 = dma.vmem_to_hbm [thread:$0]  %s1002, 128, %s1004, %s989
        $region84: #{tpu_custom_call.1} parent=59 // pred_fallthru
          _
      $region60: #{tpu_custom_call.1} parent=5 // pred_fallthru
        _
      %p1007 = scmp.le.s32.totalorder 2, %s26
      // Predicated region
      $region85: #{tpu_custom_call.1} parent=5 // pred_check
        %p1008 = pneg %p1007
      $region86: #{tpu_custom_call.1} parent=5 // pred_check_branch
        %1010 = sbr.rel (%p1008) target = $region88
      $region87: #{tpu_custom_call.1} parent=5 // pred_region
        %s1011 = ssub.s32 %s26, 2
        // Predicated region
        $region89: #{tpu_custom_call.1} parent=87 // pred_check
          %p1012 = pneg %p275
        $region90: #{tpu_custom_call.1} parent=87 // pred_check_branch
          %1014 = sbr.rel (%p1012) target = $region92
        $region91: #{tpu_custom_call.1} parent=87 // pred_region
          %s1015 = sand.u32 %s260, 1
          %s1016 = scalar_lea.sflag [#allocation4], %s1015
          %s1017 = sand.u32 %s260, 1
          %s1018 = smul.addr %s1017, 8
          %s1019 = scalar_lea.vmem [#allocation11], %s1018
          %1021 = dma.done %s1016, 128
        $region92: #{tpu_custom_call.1} parent=87 // pred_fallthru
          _
      $region88: #{tpu_custom_call.1} parent=5 // pred_fallthru
        _
    $region6: #{tpu_custom_call.1} parent=1 // loop_footer
      %s30 = sadd.s32 1, %s26
    $region7: #{tpu_custom_call.1} parent=1 // loop_footer_branch
      %25 = sbr.rel target = $region3
    $region8: #{tpu_custom_call.1} parent=1 // loop_exit
      _
    %1022 = vsyncpa [#allocation3], 1
    %s1023 = scalar_lea.sflag [#allocation3], 1
    %1024 = vsyncpa %s1023, 1
    %1025 = vsyncpa [#allocation6], 1
    %s1026 = scalar_lea.sflag [#allocation6], 1
    %1027 = vsyncpa %s1026, 1
    %1028 = vsyncpa [#allocation9], 1
    %1029 = vsyncpa [#allocation4], 1
    %s1030 = scalar_lea.sflag [#allocation4], 1
    %1031 = vsyncpa %s1030, 1

</llo_original>
